<compile_context>
chip_gen: v5e
topology: v5e:2x2
jax: 0.10.0
libtpu: 0.0.40
codegen_flags: <defaults>
</compile_context>

<pallas_src>
import functools

import jax
import jax.numpy as jnp
from jax.experimental import pallas as pl
from jax.experimental.pallas import tpu as pltpu


def _upsample_rows_kernel(x_ref, o_ref, *, factor, width):
    """Nearest-neighbour upsample in row-flattened layout.

    x_ref: (TR, W)               one row per flattened (b, c, h) index
    o_ref: (TR, factor*W*factor) the `factor` identical up-sampled output rows
                                 produced by one input row, laid out
                                 side-by-side (row-major (factor, W*factor)).
    """
    x = x_ref[...]                                   # (TR, W)
    # Width replication: col[r, j] = x[r, j // factor]       -> (TR, W*factor)
    col = jnp.repeat(x, factor, axis=1)
    wf = width * factor
    # Height replication: the `factor` output rows made from one input row are
    # identical; store `col` directly into f static lane slices of the output
    # block (no concat temporary, each output element written once).
    for k in range(factor):
        o_ref[:, k * wf:(k + 1) * wf] = col


def _vmem_capacity_bytes():
    """Physical VMEM per TensorCore, with a conservative (v7x-class) default."""
    try:
        info = pltpu.get_tpu_info()
        cap = getattr(info, "vmem_capacity_bytes", None)
        if cap:
            return int(cap)
    except Exception:
        pass
    return 64 * 1024 * 1024


def _choose_row_block(n_rows, row_out_bytes, sublane, target_bytes, min_steps):
    """Fixed sublane-aligned row-block near `target_bytes` of output per step.

    Used with a pl.cdiv grid, so it need not divide n_rows exactly.  When
    `min_steps` > 1 (v7x, 2 TensorCores) the block is capped so the grid has
    at least that many steps (balanced "parallel" work, full pipeline).
    """
    tr = (target_bytes // max(row_out_bytes, 1)) // sublane * sublane
    tr = max(tr, sublane)
    if min_steps > 1:
        cap = (n_rows // min_steps) // sublane * sublane
        if cap >= sublane:
            tr = min(tr, cap)
    # Never make the block taller than the (sublane-rounded) row count.
    tr = min(tr, pl.cdiv(n_rows, sublane) * sublane)
    return tr


class BaseUpSampling:
    """JAX/Pallas counterpart of modules/layer/scaling/base.py::BaseUpSampling."""

    def __init__(self, input_dims, output_dims, up_sampling_factor=2):
        # Base class holds no parameters (matches the PyTorch __init__).
        self.input_dims = input_dims
        self.output_dims = output_dims
        self.up_sampling_factor = int(up_sampling_factor)

    def __call__(self, x):
        return self.forward(x)

    def forward(self, x):
        # x: (B, C, H, W)  ->  (B, C, H*f, W*f), nearest-neighbour.
        B, C, H, W = x.shape
        f = self.up_sampling_factor
        if f == 1:
            return x

        out_w = f * W * f                 # row-major (f, W*f) per input row

        if out_w < 128:
            # Flattened output row is not lane-dense (< 1 vreg of lanes):
            # masked partial stores + padded 128-lane tiles would dominate.
            # TODO(synk): a lane-packing variant (g rows per vreg row) could
            # keep such tiny widths on the Pallas path; plain XLA repeat is
            # the right call at these sizes.
            return jnp.repeat(jnp.repeat(x, f, axis=2), f, axis=3)

        # Collapse (B, C, H) into a single row axis; the op is row-wise in
        # this layout so blocks may freely span plane boundaries.
        R = B * C * H
        x2 = x.reshape(R, W)              # free metadata reshape

        itemsize = jnp.dtype(x.dtype).itemsize
        sublane = {4: 8, 2: 16, 1: 32}.get(itemsize, 8)

        # Per-generation tuning: 128-MiB-VMEM chips (v5e/v6e, 1 TC) take big
        # blocks and a raised scoped-VMEM limit; 64-MiB v7x stays conservative
        # and splits into >= 8 steps so both TensorCores get work.
        vmem_cap = _vmem_capacity_bytes()
        big_vmem = vmem_cap >= 100 * 1024 * 1024
        target_out_bytes = (8 if big_vmem else 2) * 1024 * 1024
        vmem_limit = (64 if big_vmem else 32) * 1024 * 1024
        min_steps = 1 if big_vmem else 8

        tr = _choose_row_block(R, out_w * itemsize, sublane,
                               target_out_bytes, min_steps)
        grid = (pl.cdiv(R, tr),)          # ragged last block is clipped

        kernel = functools.partial(_upsample_rows_kernel, factor=f, width=W)
        out2 = pl.pallas_call(
            kernel,
            out_shape=jax.ShapeDtypeStruct((R, out_w), x.dtype),
            grid_spec=pltpu.PrefetchScalarGridSpec(
                num_scalar_prefetch=0,
                grid=grid,
                in_specs=[pl.BlockSpec((tr, W), lambda i: (i, 0))],
                out_specs=pl.BlockSpec((tr, out_w), lambda i: (i, 0)),
            ),
            compiler_params=pltpu.CompilerParams(
                dimension_semantics=("parallel",),
                vmem_limit_bytes=vmem_limit,
            ),
            # Zero-FLOP, HBM-write-bound: read x once, write f^2 * x bytes.
            cost_estimate=pl.CostEstimate(
                flops=0,
                transcendentals=0,
                bytes_accessed=int(x2.size) * itemsize * (1 + f * f),
            ),
        )(x2)

        # Free row-major metadata reshape back to NCHW.
        return out2.reshape(B, C, H * f, W * f)


if __name__ == "__main__":
    key = jax.random.PRNGKey(0)
    k0, k1 = jax.random.split(key)

    module = BaseUpSampling(input_dims=4, output_dims=4, up_sampling_factor=2)

    # Primary test: W=32, f=2 -> output row width f^2*W = 128 (lane-dense),
    # exercises the Pallas kernel path.
    B, C, H, W = 2, 4, 16, 32
    x = jax.random.normal(k0, (B, C, H, W), dtype=jnp.float32)
    y = jax.block_until_ready(module(x))
    y_ref = jnp.repeat(jnp.repeat(x, 2, axis=2), 2, axis=3)
    assert y.shape == (B, C, H * 2, W * 2), y.shape
    assert y.dtype == x.dtype
    assert bool(jnp.array_equal(y, y_ref)), "mismatch vs reference upsample"

    # Secondary test: small-W shape (f^2*W = 64 < 128) exercises the guarded
    # masked-store-avoiding fallback path.
    xs = jax.random.normal(k1, (2, 4, 16, 16), dtype=jnp.float32)
    ys = jax.block_until_ready(module(xs))
    ys_ref = jnp.repeat(jnp.repeat(xs, 2, axis=2), 2, axis=3)
    assert ys.shape == (2, 4, 32, 32), ys.shape
    assert bool(jnp.array_equal(ys, ys_ref)), "mismatch on small-W fallback"

    print("KERNEL_OK")
</pallas_src>

<mosaic_0001>
module attributes {stable_mosaic.version = 11 : i64} {
  func.func @_upsample_rows_kernel(%arg0: i32, %arg1: memref<16x32xf32, #tpu.memory_space<vmem>>, %arg2: memref<16x128xf32, #tpu.memory_space<vmem>>) attributes {dimension_semantics = [#tpu.dimension_semantics<parallel>], iteration_bounds = array<i64: 8>, scalar_prefetch = 0 : i64, scratch_operands = 0 : i64, tpu.core_type = #tpu.core_type<tc>, window_params = [{transform_indices = @transform_0, window_bounds = array<i64: 16, 32>}, {transform_indices = @transform_1, window_bounds = array<i64: 16, 128>}]} {
    %c0 = arith.constant 0 : index
    %c0_0 = arith.constant 0 : index
    %0 = vector.load %arg1[%c0, %c0_0] : memref<16x32xf32, #tpu.memory_space<vmem>>, vector<16x32xf32>
    %1 = vector.shape_cast %0 : vector<16x32xf32> to vector<16x32x1xf32>
    %2 = vector.broadcast %1 : vector<16x32x1xf32> to vector<16x32x2xf32>
    %3 = vector.shape_cast %2 : vector<16x32x2xf32> to vector<16x64xf32>
    %c0_1 = arith.constant 0 : index
    %c0_2 = arith.constant 0 : index
    %4 = vector.load %arg2[%c0_1, %c0_2] : memref<16x128xf32, #tpu.memory_space<vmem>>, vector<16x64xf32>
    tpu.vector_store %arg2[%c0_1, %c0_2], %3 {strides = array<i32>} : memref<16x128xf32, #tpu.memory_space<vmem>>, vector<16x64xf32>,
    %c0_3 = arith.constant 0 : index
    %c64 = arith.constant 64 : index
    %5 = vector.load %arg2[%c0_3, %c64] : memref<16x128xf32, #tpu.memory_space<vmem>>, vector<16x64xf32>
    tpu.vector_store %arg2[%c0_3, %c64], %3 {strides = array<i32>} : memref<16x128xf32, #tpu.memory_space<vmem>>, vector<16x64xf32>,
    return
  }
  func.func @transform_0(%arg0: i32) -> (i32, i32) {
    %c0_i32 = arith.constant 0 : i32
    %c0_i32_0 = arith.constant 0 : i32
    return %arg0, %c0_i32 : i32, i32
  }
  func.func @transform_1(%arg0: i32) -> (i32, i32) {
    %c0_i32 = arith.constant 0 : i32
    %c0_i32_0 = arith.constant 0 : i32
    return %arg0, %c0_i32 : i32, i32
  }
}

</mosaic_0001>

<llo_original>
// kernel: tpu_custom_call.1
$region0: #{tpu_custom_call.1}
  #allocation0 [shape = 'u32[]', space=smem, size = 0x4, offset = 0x4, fixed_abs, tag = 'smem constant byte address 0x4 - core index']
  #allocation1 [shape = 'u32[72,128]{1,0:T(1,128)}', space=vmem, size = 0x9000, scoped, tag = 'internal scratch']
  %s0 = inlined_call_operand.vmem [shape: f32[128,32], index: 0, kind: input, shape index: {}]
  %s1 = inlined_call_operand.hbm [shape: f32[128,128], index: 1, kind: output, shape index: {}]
  %s2 = sld [smem:[#allocation0]]
  $region37: #{tpu_custom_call.1} parent=0
    _
  %s4 = ssub.s32 1, %s2
  %s5 = scalar_select 0, %s4, %s2
  $region1: #{tpu_custom_call.1} parent=0
    #allocation2 [shape = 'u8[16384]{0}', space=vmem, size = 0x4000, scoped, tag = 'output window, operand 0']
    #allocation3 [shape = 's32[2]{0}', space=sflag, size = 0x8, scoped, tag = 'scoped memory for tpu_custom_call.1']
    %6 = vsyncpa [#allocation3], 0
    %s7 = scalar_lea.sflag [#allocation3], 1
    %8 = vsyncpa %s7, 0
    loop: start=0, step=1, limit=10
    $region2: #{tpu_custom_call.1} parent=1 // loop_pre_header
      _
    $region3: #{tpu_custom_call.1} parent=1 // loop_header
      %s10 = sphi 0, %s14
      %p11 = scmp.ge.s32.totalorder %s10, 10
      %s20 = sphi 0, %s22
      %s23 = sphi 0, %s20
      %s24 = sphi 0, %s23
      %s40 = sphi 0, %s24
      %s46 = sphi 0, %s48
      %s49 = sphi 0, %s46
      %s50 = sphi 0, %s49
      %s66 = sphi 0, %s50
    $region4: #{tpu_custom_call.1} parent=1 // loop_header_branch
      %13 = sbr.rel (%p11) target = $region8
    $region5: #{tpu_custom_call.1} parent=1 // loop_body
      %s15 = ssub.s32 %s10, 1
      %s16 = ssub.s32 %s10, 2
      %s17 = sadd.s32 %s10, 1
      %s18 = ssub.s32 %s10, %s17
      %p19 = scmp.eq.s32.totalorder %s18, 0
      %s21 = sadd.s32 %s20, 1
      %s22 = scalar_select %p19, %s20, %s21
      %p25 = pneg %p19
      %p26 = scmp.eq.s32.totalorder %s10, 7
      %p27 = por %p25, %p26
      %p28 = scmp.ne.s32.totalorder %s20, %s23
      %p29 = scmp.eq.s32.totalorder %s10, 0
      %p30 = por %p28, %p29
      %p31 = scmp.ne.s32.totalorder %s20, %s23
      %p32 = scmp.eq.s32.totalorder %s15, 7
      %p33 = por %p31, %p32
      %p34 = scmp.ne.s32.totalorder %s23, %s24
      %p35 = scmp.eq.s32.totalorder %s15, 0
      %p36 = por %p34, %p35
      %p37 = scmp.ne.s32.totalorder %s23, %s24
      %p38 = scmp.eq.s32.totalorder %s16, 7
      %p39 = por %p37, %p38
      %p41 = scmp.ne.s32.totalorder %s24, %s40
      %p42 = scmp.eq.s32.totalorder %s16, 0
      %p43 = por %p41, %p42
      %s44 = ssub.s32 %s10, %s17
      %p45 = scmp.eq.s32.totalorder %s44, 0
      %s47 = sadd.s32 %s46, 1
      %s48 = scalar_select %p45, %s46, %s47
      %p51 = pneg %p45
      %p52 = scmp.eq.s32.totalorder %s10, 7
      %p53 = por %p51, %p52
      %p54 = scmp.ne.s32.totalorder %s46, %s49
      %p55 = scmp.eq.s32.totalorder %s10, 0
      %p56 = por %p54, %p55
      %p57 = scmp.ne.s32.totalorder %s46, %s49
      %p58 = scmp.eq.s32.totalorder %s15, 7
      %p59 = por %p57, %p58
      %p60 = scmp.ne.s32.totalorder %s49, %s50
      %p61 = scmp.eq.s32.totalorder %s15, 0
      %p62 = por %p60, %p61
      %p63 = scmp.ne.s32.totalorder %s49, %s50
      %p64 = scmp.eq.s32.totalorder %s16, 7
      %p65 = por %p63, %p64
      %p67 = scmp.ne.s32.totalorder %s50, %s66
      %p68 = scmp.eq.s32.totalorder %s16, 0
      %p69 = por %p67, %p68
      %p70 = scmp.le.s32.totalorder 1, %s10
      %p71 = scmp.lt.s32.totalorder %s10, 9
      %p72 = pnand %p70, %p71
      %p73 = pneg %p72
      // Predicated region
      $region9: #{tpu_custom_call.1} parent=5 // pred_check
        _
      $region10: #{tpu_custom_call.1} parent=5 // pred_check_branch
        %75 = sbr.rel (%p72) target = $region12
      $region11: #{tpu_custom_call.1} parent=5 // pred_region
        %s76 = ssub.s32 %s10, 1
      $region12: #{tpu_custom_call.1} parent=5 // pred_fallthru
        _
      %p77 = scmp.lt.s32.totalorder %s10, 8
      // Predicated region
      $region13: #{tpu_custom_call.1} parent=5 // pred_check
        %p78 = pneg %p77
      $region14: #{tpu_custom_call.1} parent=5 // pred_check_branch
        %80 = sbr.rel (%p78) target = $region16
      $region15: #{tpu_custom_call.1} parent=5 // pred_region
        // Predicated region
        $region17: #{tpu_custom_call.1} parent=15 // pred_check
          %p81 = pneg %p30
        $region18: #{tpu_custom_call.1} parent=15 // pred_check_branch
          %83 = sbr.rel (%p81) target = $region20
        $region19: #{tpu_custom_call.1} parent=15 // pred_region
          %s84 = smul.u32 2, %s10
          %p85 = scmp.lt.s32.totalorder %s84, 15
          %s86 = scalar_select %p85, %s84, 15
          %s87 = smul.addr %s86, 8
          %s88 = scalar_lea.vmem %s0, %s87
          %s89 = smul.u32 2, %s10
        $region20: #{tpu_custom_call.1} parent=15 // pred_fallthru
          _
      $region16: #{tpu_custom_call.1} parent=5 // pred_fallthru
        _
      %p90 = scmp.le.s32.totalorder 1, %s10
      %p91 = scmp.lt.s32.totalorder %s10, 9
      %p92 = pnand %p90, %p91
      %p93 = pneg %p92
      // Predicated region
      $region21: #{tpu_custom_call.1} parent=5 // pred_check
        _
      $region22: #{tpu_custom_call.1} parent=5 // pred_check_branch
        %95 = sbr.rel (%p92) target = $region24
      $region23: #{tpu_custom_call.1} parent=5 // pred_region
        %s96 = ssub.s32 %s10, 1
        %s97 = smul.u32 2, %s15
        %p98 = scmp.lt.s32.totalorder %s97, 15
        %s99 = scalar_select %p98, %s97, 15
        %s100 = smul.addr %s99, 8
        %s101 = scalar_lea.vmem %s0, %s100
        %p102 = pneg %p36
        %p103 = pneg %p33
        %p104 = pneg %p62
        %p105 = pneg %p59
        %s106 = sand.u32 %s49, 1
        %s107 = scalar_lea.sflag [#allocation3], %s106
        %s108 = sand.u32 %s49, 1
        %s109 = smul.addr %s108, 16
        %s110 = scalar_lea.vmem [#allocation2], %s109
        %s111 = smul.u32 2, %s15
        %p112 = scmp.lt.s32.totalorder %s111, 15
        %s113 = scalar_select %p112, %s111, 15
        %s114 = smul.addr %s113, 8
        %s115 = scalar_lea.vmem %s0, %s114
        %s116 = smul.u32 2, %s15
        %s117 = smul.u32 2, %s15
        %v118 = vld [vmem:[%s115] sm:$0xff]
        %v119 = vld [vmem:[%s115 + $0x8] sm:$0xff]
        %v120 = vperm.slane %v118, 0
        %v121 = vlaneseq
        %v122 = vshrl.u32 %v121, 7
        %124 = vset.pattern.permute.xlu0 %v122
        %125 = vperm.xlu0 %124, %v120
        %v126 = vpop.permute.xlu0 %125
        %v127 = vlaneseq
        %v128 = vshrl.u32 %v127, 7
        %v129 = vadd.s32 %v128, 8
        %130 = vset.pattern.permute.xlu0 %v129
        %131 = vperm.xlu0 %130, %v120
        %v132 = vpop.permute.xlu0 %131
        %v133 = vlaneseq
        %v134 = vshrl.u32 %v133, 7
        %v135 = vadd.s32 %v134, 16
        %136 = vset.pattern.permute.xlu0 %v135
        %137 = vperm.xlu0 %136, %v120
        %v138 = vpop.permute.xlu0 %137
        %v139 = vlaneseq
        %v140 = vshrl.u32 %v139, 7
        %v141 = vadd.s32 %v140, 24
        %142 = vset.pattern.permute.xlu0 %v141
        %143 = vperm.xlu0 %142, %v120
        %v144 = vpop.permute.xlu0 %143
        %v145 = vperm.slane %v118, 1
        %v146 = vlaneseq
        %v147 = vshrl.u32 %v146, 7
        %149 = vset.pattern.permute.xlu0 %v147
        %150 = vperm.xlu0 %149, %v145
        %v151 = vpop.permute.xlu0 %150
        %v152 = vlaneseq
        %v153 = vshrl.u32 %v152, 7
        %v154 = vadd.s32 %v153, 8
        %155 = vset.pattern.permute.xlu0 %v154
        %156 = vperm.xlu0 %155, %v145
        %v157 = vpop.permute.xlu0 %156
        %v158 = vlaneseq
        %v159 = vshrl.u32 %v158, 7
        %v160 = vadd.s32 %v159, 16
        %161 = vset.pattern.permute.xlu0 %v160
        %162 = vperm.xlu0 %161, %v145
        %v163 = vpop.permute.xlu0 %162
        %v164 = vlaneseq
        %v165 = vshrl.u32 %v164, 7
        %v166 = vadd.s32 %v165, 24
        %167 = vset.pattern.permute.xlu0 %v166
        %168 = vperm.xlu0 %167, %v145
        %v169 = vpop.permute.xlu0 %168
        %v170 = vperm.slane %v118, 2
        %v171 = vlaneseq
        %v172 = vshrl.u32 %v171, 7
        %174 = vset.pattern.permute.xlu0 %v172
        %175 = vperm.xlu0 %174, %v170
        %v176 = vpop.permute.xlu0 %175
        %v177 = vlaneseq
        %v178 = vshrl.u32 %v177, 7
        %v179 = vadd.s32 %v178, 8
        %180 = vset.pattern.permute.xlu0 %v179
        %181 = vperm.xlu0 %180, %v170
        %v182 = vpop.permute.xlu0 %181
        %v183 = vlaneseq
        %v184 = vshrl.u32 %v183, 7
        %v185 = vadd.s32 %v184, 16
        %186 = vset.pattern.permute.xlu0 %v185
        %187 = vperm.xlu0 %186, %v170
        %v188 = vpop.permute.xlu0 %187
        %v189 = vlaneseq
        %v190 = vshrl.u32 %v189, 7
        %v191 = vadd.s32 %v190, 24
        %192 = vset.pattern.permute.xlu0 %v191
        %193 = vperm.xlu0 %192, %v170
        %v194 = vpop.permute.xlu0 %193
        %v195 = vperm.slane %v118, 3
        %v196 = vlaneseq
        %v197 = vshrl.u32 %v196, 7
        %199 = vset.pattern.permute.xlu0 %v197
        %200 = vperm.xlu0 %199, %v195
        %v201 = vpop.permute.xlu0 %200
        %v202 = vlaneseq
        %v203 = vshrl.u32 %v202, 7
        %v204 = vadd.s32 %v203, 8
        %205 = vset.pattern.permute.xlu0 %v204
        %206 = vperm.xlu0 %205, %v195
        %v207 = vpop.permute.xlu0 %206
        %v208 = vlaneseq
        %v209 = vshrl.u32 %v208, 7
        %v210 = vadd.s32 %v209, 16
        %211 = vset.pattern.permute.xlu0 %v210
        %212 = vperm.xlu0 %211, %v195
        %v213 = vpop.permute.xlu0 %212
        %v214 = vlaneseq
        %v215 = vshrl.u32 %v214, 7
        %v216 = vadd.s32 %v215, 24
        %217 = vset.pattern.permute.xlu0 %v216
        %218 = vperm.xlu0 %217, %v195
        %v219 = vpop.permute.xlu0 %218
        %v220 = vperm.slane %v118, 4
        %v221 = vlaneseq
        %v222 = vshrl.u32 %v221, 7
        %224 = vset.pattern.permute.xlu0 %v222
        %225 = vperm.xlu0 %224, %v220
        %v226 = vpop.permute.xlu0 %225
        %v227 = vlaneseq
        %v228 = vshrl.u32 %v227, 7
        %v229 = vadd.s32 %v228, 8
        %230 = vset.pattern.permute.xlu0 %v229
        %231 = vperm.xlu0 %230, %v220
        %v232 = vpop.permute.xlu0 %231
        %v233 = vlaneseq
        %v234 = vshrl.u32 %v233, 7
        %v235 = vadd.s32 %v234, 16
        %236 = vset.pattern.permute.xlu0 %v235
        %237 = vperm.xlu0 %236, %v220
        %v238 = vpop.permute.xlu0 %237
        %v239 = vlaneseq
        %v240 = vshrl.u32 %v239, 7
        %v241 = vadd.s32 %v240, 24
        %242 = vset.pattern.permute.xlu0 %v241
        %243 = vperm.xlu0 %242, %v220
        %v244 = vpop.permute.xlu0 %243
        %v245 = vperm.slane %v118, 5
        %v246 = vlaneseq
        %v247 = vshrl.u32 %v246, 7
        %249 = vset.pattern.permute.xlu0 %v247
        %250 = vperm.xlu0 %249, %v245
        %v251 = vpop.permute.xlu0 %250
        %v252 = vlaneseq
        %v253 = vshrl.u32 %v252, 7
        %v254 = vadd.s32 %v253, 8
        %255 = vset.pattern.permute.xlu0 %v254
        %256 = vperm.xlu0 %255, %v245
        %v257 = vpop.permute.xlu0 %256
        %v258 = vlaneseq
        %v259 = vshrl.u32 %v258, 7
        %v260 = vadd.s32 %v259, 16
        %261 = vset.pattern.permute.xlu0 %v260
        %262 = vperm.xlu0 %261, %v245
        %v263 = vpop.permute.xlu0 %262
        %v264 = vlaneseq
        %v265 = vshrl.u32 %v264, 7
        %v266 = vadd.s32 %v265, 24
        %267 = vset.pattern.permute.xlu0 %v266
        %268 = vperm.xlu0 %267, %v245
        %v269 = vpop.permute.xlu0 %268
        %v270 = vperm.slane %v118, 6
        %v271 = vlaneseq
        %v272 = vshrl.u32 %v271, 7
        %274 = vset.pattern.permute.xlu0 %v272
        %275 = vperm.xlu0 %274, %v270
        %v276 = vpop.permute.xlu0 %275
        %v277 = vlaneseq
        %v278 = vshrl.u32 %v277, 7
        %v279 = vadd.s32 %v278, 8
        %280 = vset.pattern.permute.xlu0 %v279
        %281 = vperm.xlu0 %280, %v270
        %v282 = vpop.permute.xlu0 %281
        %v283 = vlaneseq
        %v284 = vshrl.u32 %v283, 7
        %v285 = vadd.s32 %v284, 16
        %286 = vset.pattern.permute.xlu0 %v285
        %287 = vperm.xlu0 %286, %v270
        %v288 = vpop.permute.xlu0 %287
        %v289 = vlaneseq
        %v290 = vshrl.u32 %v289, 7
        %v291 = vadd.s32 %v290, 24
        %292 = vset.pattern.permute.xlu0 %v291
        %293 = vperm.xlu0 %292, %v270
        %v294 = vpop.permute.xlu0 %293
        %v295 = vperm.slane %v118, 7
        %v296 = vlaneseq
        %v297 = vshrl.u32 %v296, 7
        %299 = vset.pattern.permute.xlu0 %v297
        %300 = vperm.xlu0 %299, %v295
        %v301 = vpop.permute.xlu0 %300
        %v302 = vlaneseq
        %v303 = vshrl.u32 %v302, 7
        %v304 = vadd.s32 %v303, 8
        %305 = vset.pattern.permute.xlu0 %v304
        %306 = vperm.xlu0 %305, %v295
        %v307 = vpop.permute.xlu0 %306
        %v308 = vlaneseq
        %v309 = vshrl.u32 %v308, 7
        %v310 = vadd.s32 %v309, 16
        %311 = vset.pattern.permute.xlu0 %v310
        %312 = vperm.xlu0 %311, %v295
        %v313 = vpop.permute.xlu0 %312
        %v314 = vlaneseq
        %v315 = vshrl.u32 %v314, 7
        %v316 = vadd.s32 %v315, 24
        %317 = vset.pattern.permute.xlu0 %v316
        %318 = vperm.xlu0 %317, %v295
        %v319 = vpop.permute.xlu0 %318
        %v320 = vperm.slane %v119, 0
        %v321 = vlaneseq
        %v322 = vshrl.u32 %v321, 7
        %324 = vset.pattern.permute.xlu0 %v322
        %325 = vperm.xlu0 %324, %v320
        %v326 = vpop.permute.xlu0 %325
        %v327 = vlaneseq
        %v328 = vshrl.u32 %v327, 7
        %v329 = vadd.s32 %v328, 8
        %330 = vset.pattern.permute.xlu0 %v329
        %331 = vperm.xlu0 %330, %v320
        %v332 = vpop.permute.xlu0 %331
        %v333 = vlaneseq
        %v334 = vshrl.u32 %v333, 7
        %v335 = vadd.s32 %v334, 16
        %336 = vset.pattern.permute.xlu0 %v335
        %337 = vperm.xlu0 %336, %v320
        %v338 = vpop.permute.xlu0 %337
        %v339 = vlaneseq
        %v340 = vshrl.u32 %v339, 7
        %v341 = vadd.s32 %v340, 24
        %342 = vset.pattern.permute.xlu0 %v341
        %343 = vperm.xlu0 %342, %v320
        %v344 = vpop.permute.xlu0 %343
        %v345 = vperm.slane %v119, 1
        %v346 = vlaneseq
        %v347 = vshrl.u32 %v346, 7
        %349 = vset.pattern.permute.xlu0 %v347
        %350 = vperm.xlu0 %349, %v345
        %v351 = vpop.permute.xlu0 %350
        %v352 = vlaneseq
        %v353 = vshrl.u32 %v352, 7
        %v354 = vadd.s32 %v353, 8
        %355 = vset.pattern.permute.xlu0 %v354
        %356 = vperm.xlu0 %355, %v345
        %v357 = vpop.permute.xlu0 %356
        %v358 = vlaneseq
        %v359 = vshrl.u32 %v358, 7
        %v360 = vadd.s32 %v359, 16
        %361 = vset.pattern.permute.xlu0 %v360
        %362 = vperm.xlu0 %361, %v345
        %v363 = vpop.permute.xlu0 %362
        %v364 = vlaneseq
        %v365 = vshrl.u32 %v364, 7
        %v366 = vadd.s32 %v365, 24
        %367 = vset.pattern.permute.xlu0 %v366
        %368 = vperm.xlu0 %367, %v345
        %v369 = vpop.permute.xlu0 %368
        %v370 = vperm.slane %v119, 2
        %v371 = vlaneseq
        %v372 = vshrl.u32 %v371, 7
        %374 = vset.pattern.permute.xlu0 %v372
        %375 = vperm.xlu0 %374, %v370
        %v376 = vpop.permute.xlu0 %375
        %v377 = vlaneseq
        %v378 = vshrl.u32 %v377, 7
        %v379 = vadd.s32 %v378, 8
        %380 = vset.pattern.permute.xlu0 %v379
        %381 = vperm.xlu0 %380, %v370
        %v382 = vpop.permute.xlu0 %381
        %v383 = vlaneseq
        %v384 = vshrl.u32 %v383, 7
        %v385 = vadd.s32 %v384, 16
        %386 = vset.pattern.permute.xlu0 %v385
        %387 = vperm.xlu0 %386, %v370
        %v388 = vpop.permute.xlu0 %387
        %v389 = vlaneseq
        %v390 = vshrl.u32 %v389, 7
        %v391 = vadd.s32 %v390, 24
        %392 = vset.pattern.permute.xlu0 %v391
        %393 = vperm.xlu0 %392, %v370
        %v394 = vpop.permute.xlu0 %393
        %v395 = vperm.slane %v119, 3
        %v396 = vlaneseq
        %v397 = vshrl.u32 %v396, 7
        %399 = vset.pattern.permute.xlu0 %v397
        %400 = vperm.xlu0 %399, %v395
        %v401 = vpop.permute.xlu0 %400
        %v402 = vlaneseq
        %v403 = vshrl.u32 %v402, 7
        %v404 = vadd.s32 %v403, 8
        %405 = vset.pattern.permute.xlu0 %v404
        %406 = vperm.xlu0 %405, %v395
        %v407 = vpop.permute.xlu0 %406
        %v408 = vlaneseq
        %v409 = vshrl.u32 %v408, 7
        %v410 = vadd.s32 %v409, 16
        %411 = vset.pattern.permute.xlu0 %v410
        %412 = vperm.xlu0 %411, %v395
        %v413 = vpop.permute.xlu0 %412
        %v414 = vlaneseq
        %v415 = vshrl.u32 %v414, 7
        %v416 = vadd.s32 %v415, 24
        %417 = vset.pattern.permute.xlu0 %v416
        %418 = vperm.xlu0 %417, %v395
        %v419 = vpop.permute.xlu0 %418
        %v420 = vperm.slane %v119, 4
        %v421 = vlaneseq
        %v422 = vshrl.u32 %v421, 7
        %424 = vset.pattern.permute.xlu0 %v422
        %425 = vperm.xlu0 %424, %v420
        %v426 = vpop.permute.xlu0 %425
        %v427 = vlaneseq
        %v428 = vshrl.u32 %v427, 7
        %v429 = vadd.s32 %v428, 8
        %430 = vset.pattern.permute.xlu0 %v429
        %431 = vperm.xlu0 %430, %v420
        %v432 = vpop.permute.xlu0 %431
        %v433 = vlaneseq
        %v434 = vshrl.u32 %v433, 7
        %v435 = vadd.s32 %v434, 16
        %436 = vset.pattern.permute.xlu0 %v435
        %437 = vperm.xlu0 %436, %v420
        %v438 = vpop.permute.xlu0 %437
        %v439 = vlaneseq
        %v440 = vshrl.u32 %v439, 7
        %v441 = vadd.s32 %v440, 24
        %442 = vset.pattern.permute.xlu0 %v441
        %443 = vperm.xlu0 %442, %v420
        %v444 = vpop.permute.xlu0 %443
        %v445 = vperm.slane %v119, 5
        %v446 = vlaneseq
        %v447 = vshrl.u32 %v446, 7
        %449 = vset.pattern.permute.xlu0 %v447
        %450 = vperm.xlu0 %449, %v445
        %v451 = vpop.permute.xlu0 %450
        %v452 = vlaneseq
        %v453 = vshrl.u32 %v452, 7
        %v454 = vadd.s32 %v453, 8
        %455 = vset.pattern.permute.xlu0 %v454
        %456 = vperm.xlu0 %455, %v445
        %v457 = vpop.permute.xlu0 %456
        %v458 = vlaneseq
        %v459 = vshrl.u32 %v458, 7
        %v460 = vadd.s32 %v459, 16
        %461 = vset.pattern.permute.xlu0 %v460
        %462 = vperm.xlu0 %461, %v445
        %v463 = vpop.permute.xlu0 %462
        %v464 = vlaneseq
        %v465 = vshrl.u32 %v464, 7
        %v466 = vadd.s32 %v465, 24
        %467 = vset.pattern.permute.xlu0 %v466
        %468 = vperm.xlu0 %467, %v445
        %v469 = vpop.permute.xlu0 %468
        %v470 = vperm.slane %v119, 6
        %v471 = vlaneseq
        %v472 = vshrl.u32 %v471, 7
        %474 = vset.pattern.permute.xlu0 %v472
        %475 = vperm.xlu0 %474, %v470
        %v476 = vpop.permute.xlu0 %475
        %v477 = vlaneseq
        %v478 = vshrl.u32 %v477, 7
        %v479 = vadd.s32 %v478, 8
        %480 = vset.pattern.permute.xlu0 %v479
        %481 = vperm.xlu0 %480, %v470
        %v482 = vpop.permute.xlu0 %481
        %v483 = vlaneseq
        %v484 = vshrl.u32 %v483, 7
        %v485 = vadd.s32 %v484, 16
        %486 = vset.pattern.permute.xlu0 %v485
        %487 = vperm.xlu0 %486, %v470
        %v488 = vpop.permute.xlu0 %487
        %v489 = vlaneseq
        %v490 = vshrl.u32 %v489, 7
        %v491 = vadd.s32 %v490, 24
        %492 = vset.pattern.permute.xlu0 %v491
        %493 = vperm.xlu0 %492, %v470
        %v494 = vpop.permute.xlu0 %493
        %v495 = vperm.slane %v119, 7
        %v496 = vlaneseq
        %v497 = vshrl.u32 %v496, 7
        %499 = vset.pattern.permute.xlu0 %v497
        %500 = vperm.xlu0 %499, %v495
        %v501 = vpop.permute.xlu0 %500
        %v502 = vlaneseq
        %v503 = vshrl.u32 %v502, 7
        %v504 = vadd.s32 %v503, 8
        %505 = vset.pattern.permute.xlu0 %v504
        %506 = vperm.xlu0 %505, %v495
        %v507 = vpop.permute.xlu0 %506
        %v508 = vlaneseq
        %v509 = vshrl.u32 %v508, 7
        %v510 = vadd.s32 %v509, 16
        %511 = vset.pattern.permute.xlu0 %v510
        %512 = vperm.xlu0 %511, %v495
        %v513 = vpop.permute.xlu0 %512
        %v514 = vlaneseq
        %v515 = vshrl.u32 %v514, 7
        %v516 = vadd.s32 %v515, 24
        %517 = vset.pattern.permute.xlu0 %v516
        %518 = vperm.xlu0 %517, %v495
        %v519 = vpop.permute.xlu0 %518
        %v520 = vrot.slane %v176, 4
        %vm521 = vcmask 1047556
        %v522 = vsel %vm521, %v520, %v126
        %v523 = vrot.slane %v126, 4
        %v524 = vsel %vm521, %v176, %v523
        %v526 = vunpack.c.l.s4 1983009808
        %v527 = vunpack.c.0.s8 %v526
        %v528 = vperm.slane %v522, %v527
        %v530 = vunpack.c.l.s4 1983009808
        %v531 = vunpack.c.0.s8 %v530
        %v532 = vperm.slane %v524, %v531
        %v533 = vrot.slane %v201, 4
        %v534 = vsel %vm521, %v533, %v151
        %v535 = vrot.slane %v151, 4
        %v536 = vsel %vm521, %v201, %v535
        %v538 = vunpack.c.l.s4 1983009808
        %v539 = vunpack.c.0.s8 %v538
        %v540 = vperm.slane %v534, %v539
        %v542 = vunpack.c.l.s4 1983009808
        %v543 = vunpack.c.0.s8 %v542
        %v544 = vperm.slane %v536, %v543
        %v545 = vrot.slane %v276, 4
        %v546 = vsel %vm521, %v545, %v226
        %v547 = vrot.slane %v226, 4
        %v548 = vsel %vm521, %v276, %v547
        %v550 = vunpack.c.l.s4 1983009808
        %v551 = vunpack.c.0.s8 %v550
        %v552 = vperm.slane %v546, %v551
        %v554 = vunpack.c.l.s4 1983009808
        %v555 = vunpack.c.0.s8 %v554
        %v556 = vperm.slane %v548, %v555
        %v557 = vrot.slane %v301, 4
        %v558 = vsel %vm521, %v557, %v251
        %v559 = vrot.slane %v251, 4
        %v560 = vsel %vm521, %v301, %v559
        %v562 = vunpack.c.l.s4 1983009808
        %v563 = vunpack.c.0.s8 %v562
        %v564 = vperm.slane %v558, %v563
        %v566 = vunpack.c.l.s4 1983009808
        %v567 = vunpack.c.0.s8 %v566
        %v568 = vperm.slane %v560, %v567
        %v569 = vrot.slane %v540, 4
        %v570 = vsel %vm521, %v569, %v528
        %v571 = vrot.slane %v528, 4
        %v572 = vsel %vm521, %v540, %v571
        %v574 = vunpack.c.l.s4 1934713408
        %v575 = vunpack.c.0.s8 %v574
        %v576 = vperm.slane %v570, %v575
        %v578 = vunpack.c.l.s4 1934713408
        %v579 = vunpack.c.0.s8 %v578
        %v580 = vperm.slane %v572, %v579
        %v581 = vrot.slane %v544, 4
        %v582 = vsel %vm521, %v581, %v532
        %v583 = vrot.slane %v532, 4
        %v584 = vsel %vm521, %v544, %v583
        %v586 = vunpack.c.l.s4 1934713408
        %v587 = vunpack.c.0.s8 %v586
        %v588 = vperm.slane %v582, %v587
        %v590 = vunpack.c.l.s4 1934713408
        %v591 = vunpack.c.0.s8 %v590
        %v592 = vperm.slane %v584, %v591
        %v593 = vrot.slane %v564, 4
        %v594 = vsel %vm521, %v593, %v552
        %v595 = vrot.slane %v552, 4
        %v596 = vsel %vm521, %v564, %v595
        %v598 = vunpack.c.l.s4 1934713408
        %v599 = vunpack.c.0.s8 %v598
        %v600 = vperm.slane %v594, %v599
        %v602 = vunpack.c.l.s4 1934713408
        %v603 = vunpack.c.0.s8 %v602
        %v604 = vperm.slane %v596, %v603
        %v605 = vrot.slane %v568, 4
        %v606 = vsel %vm521, %v605, %v556
        %v607 = vrot.slane %v556, 4
        %v608 = vsel %vm521, %v568, %v607
        %v610 = vunpack.c.l.s4 1934713408
        %v611 = vunpack.c.0.s8 %v610
        %v612 = vperm.slane %v606, %v611
        %v614 = vunpack.c.l.s4 1934713408
        %v615 = vunpack.c.0.s8 %v614
        %v616 = vperm.slane %v608, %v615
        %v617 = vrot.slane %v600, 4
        %v618 = vsel %vm521, %v617, %v576
        %v619 = vrot.slane %v576, 4
        %v620 = vsel %vm521, %v600, %v619
        %v621 = vrot.slane %v604, 4
        %v622 = vsel %vm521, %v621, %v580
        %v623 = vrot.slane %v580, 4
        %v624 = vsel %vm521, %v604, %v623
        %v625 = vrot.slane %v612, 4
        %v626 = vsel %vm521, %v625, %v588
        %v627 = vrot.slane %v588, 4
        %v628 = vsel %vm521, %v612, %v627
        %v629 = vrot.slane %v616, 4
        %v630 = vsel %vm521, %v629, %v592
        %v631 = vrot.slane %v592, 4
        %v632 = vsel %vm521, %v616, %v631
        %v633 = vrot.slane %v376, 4
        %v634 = vsel %vm521, %v633, %v326
        %v635 = vrot.slane %v326, 4
        %v636 = vsel %vm521, %v376, %v635
        %v638 = vunpack.c.l.s4 1983009808
        %v639 = vunpack.c.0.s8 %v638
        %v640 = vperm.slane %v634, %v639
        %v642 = vunpack.c.l.s4 1983009808
        %v643 = vunpack.c.0.s8 %v642
        %v644 = vperm.slane %v636, %v643
        %v645 = vrot.slane %v401, 4
        %v646 = vsel %vm521, %v645, %v351
        %v647 = vrot.slane %v351, 4
        %v648 = vsel %vm521, %v401, %v647
        %v650 = vunpack.c.l.s4 1983009808
        %v651 = vunpack.c.0.s8 %v650
        %v652 = vperm.slane %v646, %v651
        %v654 = vunpack.c.l.s4 1983009808
        %v655 = vunpack.c.0.s8 %v654
        %v656 = vperm.slane %v648, %v655
        %v657 = vrot.slane %v476, 4
        %v658 = vsel %vm521, %v657, %v426
        %v659 = vrot.slane %v426, 4
        %v660 = vsel %vm521, %v476, %v659
        %v662 = vunpack.c.l.s4 1983009808
        %v663 = vunpack.c.0.s8 %v662
        %v664 = vperm.slane %v658, %v663
        %v666 = vunpack.c.l.s4 1983009808
        %v667 = vunpack.c.0.s8 %v666
        %v668 = vperm.slane %v660, %v667
        %v669 = vrot.slane %v501, 4
        %v670 = vsel %vm521, %v669, %v451
        %v671 = vrot.slane %v451, 4
        %v672 = vsel %vm521, %v501, %v671
        %v674 = vunpack.c.l.s4 1983009808
        %v675 = vunpack.c.0.s8 %v674
        %v676 = vperm.slane %v670, %v675
        %v678 = vunpack.c.l.s4 1983009808
        %v679 = vunpack.c.0.s8 %v678
        %v680 = vperm.slane %v672, %v679
        %v681 = vrot.slane %v652, 4
        %v682 = vsel %vm521, %v681, %v640
        %v683 = vrot.slane %v640, 4
        %v684 = vsel %vm521, %v652, %v683
        %v686 = vunpack.c.l.s4 1934713408
        %v687 = vunpack.c.0.s8 %v686
        %v688 = vperm.slane %v682, %v687
        %v690 = vunpack.c.l.s4 1934713408
        %v691 = vunpack.c.0.s8 %v690
        %v692 = vperm.slane %v684, %v691
        %v693 = vrot.slane %v656, 4
        %v694 = vsel %vm521, %v693, %v644
        %v695 = vrot.slane %v644, 4
        %v696 = vsel %vm521, %v656, %v695
        %v698 = vunpack.c.l.s4 1934713408
        %v699 = vunpack.c.0.s8 %v698
        %v700 = vperm.slane %v694, %v699
        %v702 = vunpack.c.l.s4 1934713408
        %v703 = vunpack.c.0.s8 %v702
        %v704 = vperm.slane %v696, %v703
        %v705 = vrot.slane %v676, 4
        %v706 = vsel %vm521, %v705, %v664
        %v707 = vrot.slane %v664, 4
        %v708 = vsel %vm521, %v676, %v707
        %v710 = vunpack.c.l.s4 1934713408
        %v711 = vunpack.c.0.s8 %v710
        %v712 = vperm.slane %v706, %v711
        %v714 = vunpack.c.l.s4 1934713408
        %v715 = vunpack.c.0.s8 %v714
        %v716 = vperm.slane %v708, %v715
        %v717 = vrot.slane %v680, 4
        %v718 = vsel %vm521, %v717, %v668
        %v719 = vrot.slane %v668, 4
        %v720 = vsel %vm521, %v680, %v719
        %v722 = vunpack.c.l.s4 1934713408
        %v723 = vunpack.c.0.s8 %v722
        %v724 = vperm.slane %v718, %v723
        %v726 = vunpack.c.l.s4 1934713408
        %v727 = vunpack.c.0.s8 %v726
        %v728 = vperm.slane %v720, %v727
        %v729 = vrot.slane %v712, 4
        %v730 = vsel %vm521, %v729, %v688
        %v731 = vrot.slane %v688, 4
        %v732 = vsel %vm521, %v712, %v731
        %v733 = vrot.slane %v716, 4
        %v734 = vsel %vm521, %v733, %v692
        %v735 = vrot.slane %v692, 4
        %v736 = vsel %vm521, %v716, %v735
        %v737 = vrot.slane %v724, 4
        %v738 = vsel %vm521, %v737, %v700
        %v739 = vrot.slane %v700, 4
        %v740 = vsel %vm521, %v724, %v739
        %v741 = vrot.slane %v728, 4
        %v742 = vsel %vm521, %v741, %v704
        %v743 = vrot.slane %v704, 4
        %v744 = vsel %vm521, %v728, %v743
        %v745 = vrot.slane %v182, 4
        %v746 = vsel %vm521, %v745, %v132
        %v747 = vrot.slane %v132, 4
        %v748 = vsel %vm521, %v182, %v747
        %v750 = vunpack.c.l.s4 1983009808
        %v751 = vunpack.c.0.s8 %v750
        %v752 = vperm.slane %v746, %v751
        %v754 = vunpack.c.l.s4 1983009808
        %v755 = vunpack.c.0.s8 %v754
        %v756 = vperm.slane %v748, %v755
        %v757 = vrot.slane %v207, 4
        %v758 = vsel %vm521, %v757, %v157
        %v759 = vrot.slane %v157, 4
        %v760 = vsel %vm521, %v207, %v759
        %v762 = vunpack.c.l.s4 1983009808
        %v763 = vunpack.c.0.s8 %v762
        %v764 = vperm.slane %v758, %v763
        %v766 = vunpack.c.l.s4 1983009808
        %v767 = vunpack.c.0.s8 %v766
        %v768 = vperm.slane %v760, %v767
        %v769 = vrot.slane %v282, 4
        %v770 = vsel %vm521, %v769, %v232
        %v771 = vrot.slane %v232, 4
        %v772 = vsel %vm521, %v282, %v771
        %v774 = vunpack.c.l.s4 1983009808
        %v775 = vunpack.c.0.s8 %v774
        %v776 = vperm.slane %v770, %v775
        %v778 = vunpack.c.l.s4 1983009808
        %v779 = vunpack.c.0.s8 %v778
        %v780 = vperm.slane %v772, %v779
        %v781 = vrot.slane %v307, 4
        %v782 = vsel %vm521, %v781, %v257
        %v783 = vrot.slane %v257, 4
        %v784 = vsel %vm521, %v307, %v783
        %v786 = vunpack.c.l.s4 1983009808
        %v787 = vunpack.c.0.s8 %v786
        %v788 = vperm.slane %v782, %v787
        %v790 = vunpack.c.l.s4 1983009808
        %v791 = vunpack.c.0.s8 %v790
        %v792 = vperm.slane %v784, %v791
        %v793 = vrot.slane %v764, 4
        %v794 = vsel %vm521, %v793, %v752
        %v795 = vrot.slane %v752, 4
        %v796 = vsel %vm521, %v764, %v795
        %v798 = vunpack.c.l.s4 1934713408
        %v799 = vunpack.c.0.s8 %v798
        %v800 = vperm.slane %v794, %v799
        %v802 = vunpack.c.l.s4 1934713408
        %v803 = vunpack.c.0.s8 %v802
        %v804 = vperm.slane %v796, %v803
        %v805 = vrot.slane %v768, 4
        %v806 = vsel %vm521, %v805, %v756
        %v807 = vrot.slane %v756, 4
        %v808 = vsel %vm521, %v768, %v807
        %v810 = vunpack.c.l.s4 1934713408
        %v811 = vunpack.c.0.s8 %v810
        %v812 = vperm.slane %v806, %v811
        %v814 = vunpack.c.l.s4 1934713408
        %v815 = vunpack.c.0.s8 %v814
        %v816 = vperm.slane %v808, %v815
        %v817 = vrot.slane %v788, 4
        %v818 = vsel %vm521, %v817, %v776
        %v819 = vrot.slane %v776, 4
        %v820 = vsel %vm521, %v788, %v819
        %v822 = vunpack.c.l.s4 1934713408
        %v823 = vunpack.c.0.s8 %v822
        %v824 = vperm.slane %v818, %v823
        %v826 = vunpack.c.l.s4 1934713408
        %v827 = vunpack.c.0.s8 %v826
        %v828 = vperm.slane %v820, %v827
        %v829 = vrot.slane %v792, 4
        %v830 = vsel %vm521, %v829, %v780
        %v831 = vrot.slane %v780, 4
        %v832 = vsel %vm521, %v792, %v831
        %v834 = vunpack.c.l.s4 1934713408
        %v835 = vunpack.c.0.s8 %v834
        %v836 = vperm.slane %v830, %v835
        %v838 = vunpack.c.l.s4 1934713408
        %v839 = vunpack.c.0.s8 %v838
        %v840 = vperm.slane %v832, %v839
        %v841 = vrot.slane %v824, 4
        %v842 = vsel %vm521, %v841, %v800
        %v843 = vrot.slane %v800, 4
        %v844 = vsel %vm521, %v824, %v843
        %v845 = vrot.slane %v828, 4
        %v846 = vsel %vm521, %v845, %v804
        %v847 = vrot.slane %v804, 4
        %v848 = vsel %vm521, %v828, %v847
        %v849 = vrot.slane %v836, 4
        %v850 = vsel %vm521, %v849, %v812
        %v851 = vrot.slane %v812, 4
        %v852 = vsel %vm521, %v836, %v851
        %v853 = vrot.slane %v840, 4
        %v854 = vsel %vm521, %v853, %v816
        %v855 = vrot.slane %v816, 4
        %v856 = vsel %vm521, %v840, %v855
        %v857 = vrot.slane %v382, 4
        %v858 = vsel %vm521, %v857, %v332
        %v859 = vrot.slane %v332, 4
        %v860 = vsel %vm521, %v382, %v859
        %v862 = vunpack.c.l.s4 1983009808
        %v863 = vunpack.c.0.s8 %v862
        %v864 = vperm.slane %v858, %v863
        %v866 = vunpack.c.l.s4 1983009808
        %v867 = vunpack.c.0.s8 %v866
        %v868 = vperm.slane %v860, %v867
        %v869 = vrot.slane %v407, 4
        %v870 = vsel %vm521, %v869, %v357
        %v871 = vrot.slane %v357, 4
        %v872 = vsel %vm521, %v407, %v871
        %v874 = vunpack.c.l.s4 1983009808
        %v875 = vunpack.c.0.s8 %v874
        %v876 = vperm.slane %v870, %v875
        %v878 = vunpack.c.l.s4 1983009808
        %v879 = vunpack.c.0.s8 %v878
        %v880 = vperm.slane %v872, %v879
        %v881 = vrot.slane %v482, 4
        %v882 = vsel %vm521, %v881, %v432
        %v883 = vrot.slane %v432, 4
        %v884 = vsel %vm521, %v482, %v883
        %v886 = vunpack.c.l.s4 1983009808
        %v887 = vunpack.c.0.s8 %v886
        %v888 = vperm.slane %v882, %v887
        %v890 = vunpack.c.l.s4 1983009808
        %v891 = vunpack.c.0.s8 %v890
        %v892 = vperm.slane %v884, %v891
        %v893 = vrot.slane %v507, 4
        %v894 = vsel %vm521, %v893, %v457
        %v895 = vrot.slane %v457, 4
        %v896 = vsel %vm521, %v507, %v895
        %v898 = vunpack.c.l.s4 1983009808
        %v899 = vunpack.c.0.s8 %v898
        %v900 = vperm.slane %v894, %v899
        %v902 = vunpack.c.l.s4 1983009808
        %v903 = vunpack.c.0.s8 %v902
        %v904 = vperm.slane %v896, %v903
        %v905 = vrot.slane %v876, 4
        %v906 = vsel %vm521, %v905, %v864
        %v907 = vrot.slane %v864, 4
        %v908 = vsel %vm521, %v876, %v907
        %v910 = vunpack.c.l.s4 1934713408
        %v911 = vunpack.c.0.s8 %v910
        %v912 = vperm.slane %v906, %v911
        %v914 = vunpack.c.l.s4 1934713408
        %v915 = vunpack.c.0.s8 %v914
        %v916 = vperm.slane %v908, %v915
        %v917 = vrot.slane %v880, 4
        %v918 = vsel %vm521, %v917, %v868
        %v919 = vrot.slane %v868, 4
        %v920 = vsel %vm521, %v880, %v919
        %v922 = vunpack.c.l.s4 1934713408
        %v923 = vunpack.c.0.s8 %v922
        %v924 = vperm.slane %v918, %v923
        %v926 = vunpack.c.l.s4 1934713408
        %v927 = vunpack.c.0.s8 %v926
        %v928 = vperm.slane %v920, %v927
        %v929 = vrot.slane %v900, 4
        %v930 = vsel %vm521, %v929, %v888
        %v931 = vrot.slane %v888, 4
        %v932 = vsel %vm521, %v900, %v931
        %v934 = vunpack.c.l.s4 1934713408
        %v935 = vunpack.c.0.s8 %v934
        %v936 = vperm.slane %v930, %v935
        %v938 = vunpack.c.l.s4 1934713408
        %v939 = vunpack.c.0.s8 %v938
        %v940 = vperm.slane %v932, %v939
        %v941 = vrot.slane %v904, 4
        %v942 = vsel %vm521, %v941, %v892
        %v943 = vrot.slane %v892, 4
        %v944 = vsel %vm521, %v904, %v943
        %v946 = vunpack.c.l.s4 1934713408
        %v947 = vunpack.c.0.s8 %v946
        %v948 = vperm.slane %v942, %v947
        %v950 = vunpack.c.l.s4 1934713408
        %v951 = vunpack.c.0.s8 %v950
        %v952 = vperm.slane %v944, %v951
        %v953 = vrot.slane %v936, 4
        %v954 = vsel %vm521, %v953, %v912
        %v955 = vrot.slane %v912, 4
        %v956 = vsel %vm521, %v936, %v955
        %v957 = vrot.slane %v940, 4
        %v958 = vsel %vm521, %v957, %v916
        %v959 = vrot.slane %v916, 4
        %v960 = vsel %vm521, %v940, %v959
        %v961 = vrot.slane %v948, 4
        %v962 = vsel %vm521, %v961, %v924
        %v963 = vrot.slane %v924, 4
        %v964 = vsel %vm521, %v948, %v963
        %v965 = vrot.slane %v952, 4
        %v966 = vsel %vm521, %v965, %v928
        %v967 = vrot.slane %v928, 4
        %v968 = vsel %vm521, %v952, %v967
        %v969 = vrot.slane %v188, 4
        %v970 = vsel %vm521, %v969, %v138
        %v971 = vrot.slane %v138, 4
        %v972 = vsel %vm521, %v188, %v971
        %v974 = vunpack.c.l.s4 1983009808
        %v975 = vunpack.c.0.s8 %v974
        %v976 = vperm.slane %v970, %v975
        %v978 = vunpack.c.l.s4 1983009808
        %v979 = vunpack.c.0.s8 %v978
        %v980 = vperm.slane %v972, %v979
        %v981 = vrot.slane %v213, 4
        %v982 = vsel %vm521, %v981, %v163
        %v983 = vrot.slane %v163, 4
        %v984 = vsel %vm521, %v213, %v983
        %v986 = vunpack.c.l.s4 1983009808
        %v987 = vunpack.c.0.s8 %v986
        %v988 = vperm.slane %v982, %v987
        %v990 = vunpack.c.l.s4 1983009808
        %v991 = vunpack.c.0.s8 %v990
        %v992 = vperm.slane %v984, %v991
        %v993 = vrot.slane %v288, 4
        %v994 = vsel %vm521, %v993, %v238
        %v995 = vrot.slane %v238, 4
        %v996 = vsel %vm521, %v288, %v995
        %v998 = vunpack.c.l.s4 1983009808
        %v999 = vunpack.c.0.s8 %v998
        %v1000 = vperm.slane %v994, %v999
        %v1002 = vunpack.c.l.s4 1983009808
        %v1003 = vunpack.c.0.s8 %v1002
        %v1004 = vperm.slane %v996, %v1003
        %v1005 = vrot.slane %v313, 4
        %v1006 = vsel %vm521, %v1005, %v263
        %v1007 = vrot.slane %v263, 4
        %v1008 = vsel %vm521, %v313, %v1007
        %v1010 = vunpack.c.l.s4 1983009808
        %v1011 = vunpack.c.0.s8 %v1010
        %v1012 = vperm.slane %v1006, %v1011
        %v1014 = vunpack.c.l.s4 1983009808
        %v1015 = vunpack.c.0.s8 %v1014
        %v1016 = vperm.slane %v1008, %v1015
        %v1017 = vrot.slane %v988, 4
        %v1018 = vsel %vm521, %v1017, %v976
        %v1019 = vrot.slane %v976, 4
        %v1020 = vsel %vm521, %v988, %v1019
        %v1022 = vunpack.c.l.s4 1934713408
        %v1023 = vunpack.c.0.s8 %v1022
        %v1024 = vperm.slane %v1018, %v1023
        %v1026 = vunpack.c.l.s4 1934713408
        %v1027 = vunpack.c.0.s8 %v1026
        %v1028 = vperm.slane %v1020, %v1027
        %v1029 = vrot.slane %v992, 4
        %v1030 = vsel %vm521, %v1029, %v980
        %v1031 = vrot.slane %v980, 4
        %v1032 = vsel %vm521, %v992, %v1031
        %v1034 = vunpack.c.l.s4 1934713408
        %v1035 = vunpack.c.0.s8 %v1034
        %v1036 = vperm.slane %v1030, %v1035
        %v1038 = vunpack.c.l.s4 1934713408
        %v1039 = vunpack.c.0.s8 %v1038
        %v1040 = vperm.slane %v1032, %v1039
        %v1041 = vrot.slane %v1012, 4
        %v1042 = vsel %vm521, %v1041, %v1000
        %v1043 = vrot.slane %v1000, 4
        %v1044 = vsel %vm521, %v1012, %v1043
        %v1046 = vunpack.c.l.s4 1934713408
        %v1047 = vunpack.c.0.s8 %v1046
        %v1048 = vperm.slane %v1042, %v1047
        %v1050 = vunpack.c.l.s4 1934713408
        %v1051 = vunpack.c.0.s8 %v1050
        %v1052 = vperm.slane %v1044, %v1051
        %v1053 = vrot.slane %v1016, 4
        %v1054 = vsel %vm521, %v1053, %v1004
        %v1055 = vrot.slane %v1004, 4
        %v1056 = vsel %vm521, %v1016, %v1055
        %v1058 = vunpack.c.l.s4 1934713408
        %v1059 = vunpack.c.0.s8 %v1058
        %v1060 = vperm.slane %v1054, %v1059
        %v1062 = vunpack.c.l.s4 1934713408
        %v1063 = vunpack.c.0.s8 %v1062
        %v1064 = vperm.slane %v1056, %v1063
        %v1065 = vrot.slane %v1048, 4
        %v1066 = vsel %vm521, %v1065, %v1024
        %v1067 = vrot.slane %v1024, 4
        %v1068 = vsel %vm521, %v1048, %v1067
        %v1069 = vrot.slane %v1052, 4
        %v1070 = vsel %vm521, %v1069, %v1028
        %v1071 = vrot.slane %v1028, 4
        %v1072 = vsel %vm521, %v1052, %v1071
        %v1073 = vrot.slane %v1060, 4
        %v1074 = vsel %vm521, %v1073, %v1036
        %v1075 = vrot.slane %v1036, 4
        %v1076 = vsel %vm521, %v1060, %v1075
        %v1077 = vrot.slane %v1064, 4
        %v1078 = vsel %vm521, %v1077, %v1040
        %v1079 = vrot.slane %v1040, 4
        %v1080 = vsel %vm521, %v1064, %v1079
        %v1081 = vrot.slane %v388, 4
        %v1082 = vsel %vm521, %v1081, %v338
        %v1083 = vrot.slane %v338, 4
        %v1084 = vsel %vm521, %v388, %v1083
        %v1086 = vunpack.c.l.s4 1983009808
        %v1087 = vunpack.c.0.s8 %v1086
        %v1088 = vperm.slane %v1082, %v1087
        %v1090 = vunpack.c.l.s4 1983009808
        %v1091 = vunpack.c.0.s8 %v1090
        %v1092 = vperm.slane %v1084, %v1091
        %v1093 = vrot.slane %v413, 4
        %v1094 = vsel %vm521, %v1093, %v363
        %v1095 = vrot.slane %v363, 4
        %v1096 = vsel %vm521, %v413, %v1095
        %v1098 = vunpack.c.l.s4 1983009808
        %v1099 = vunpack.c.0.s8 %v1098
        %v1100 = vperm.slane %v1094, %v1099
        %v1102 = vunpack.c.l.s4 1983009808
        %v1103 = vunpack.c.0.s8 %v1102
        %v1104 = vperm.slane %v1096, %v1103
        %v1105 = vrot.slane %v488, 4
        %v1106 = vsel %vm521, %v1105, %v438
        %v1107 = vrot.slane %v438, 4
        %v1108 = vsel %vm521, %v488, %v1107
        %v1110 = vunpack.c.l.s4 1983009808
        %v1111 = vunpack.c.0.s8 %v1110
        %v1112 = vperm.slane %v1106, %v1111
        %v1114 = vunpack.c.l.s4 1983009808
        %v1115 = vunpack.c.0.s8 %v1114
        %v1116 = vperm.slane %v1108, %v1115
        %v1117 = vrot.slane %v513, 4
        %v1118 = vsel %vm521, %v1117, %v463
        %v1119 = vrot.slane %v463, 4
        %v1120 = vsel %vm521, %v513, %v1119
        %v1122 = vunpack.c.l.s4 1983009808
        %v1123 = vunpack.c.0.s8 %v1122
        %v1124 = vperm.slane %v1118, %v1123
        %v1126 = vunpack.c.l.s4 1983009808
        %v1127 = vunpack.c.0.s8 %v1126
        %v1128 = vperm.slane %v1120, %v1127
        %v1129 = vrot.slane %v1100, 4
        %v1130 = vsel %vm521, %v1129, %v1088
        %v1131 = vrot.slane %v1088, 4
        %v1132 = vsel %vm521, %v1100, %v1131
        %v1134 = vunpack.c.l.s4 1934713408
        %v1135 = vunpack.c.0.s8 %v1134
        %v1136 = vperm.slane %v1130, %v1135
        %v1138 = vunpack.c.l.s4 1934713408
        %v1139 = vunpack.c.0.s8 %v1138
        %v1140 = vperm.slane %v1132, %v1139
        %v1141 = vrot.slane %v1104, 4
        %v1142 = vsel %vm521, %v1141, %v1092
        %v1143 = vrot.slane %v1092, 4
        %v1144 = vsel %vm521, %v1104, %v1143
        %v1146 = vunpack.c.l.s4 1934713408
        %v1147 = vunpack.c.0.s8 %v1146
        %v1148 = vperm.slane %v1142, %v1147
        %v1150 = vunpack.c.l.s4 1934713408
        %v1151 = vunpack.c.0.s8 %v1150
        %v1152 = vperm.slane %v1144, %v1151
        %v1153 = vrot.slane %v1124, 4
        %v1154 = vsel %vm521, %v1153, %v1112
        %v1155 = vrot.slane %v1112, 4
        %v1156 = vsel %vm521, %v1124, %v1155
        %v1158 = vunpack.c.l.s4 1934713408
        %v1159 = vunpack.c.0.s8 %v1158
        %v1160 = vperm.slane %v1154, %v1159
        %v1162 = vunpack.c.l.s4 1934713408
        %v1163 = vunpack.c.0.s8 %v1162
        %v1164 = vperm.slane %v1156, %v1163
        %v1165 = vrot.slane %v1128, 4
        %v1166 = vsel %vm521, %v1165, %v1116
        %v1167 = vrot.slane %v1116, 4
        %v1168 = vsel %vm521, %v1128, %v1167
        %v1170 = vunpack.c.l.s4 1934713408
        %v1171 = vunpack.c.0.s8 %v1170
        %v1172 = vperm.slane %v1166, %v1171
        %v1174 = vunpack.c.l.s4 1934713408
        %v1175 = vunpack.c.0.s8 %v1174
        %v1176 = vperm.slane %v1168, %v1175
        %v1177 = vrot.slane %v1160, 4
        %v1178 = vsel %vm521, %v1177, %v1136
        %v1179 = vrot.slane %v1136, 4
        %v1180 = vsel %vm521, %v1160, %v1179
        %v1181 = vrot.slane %v1164, 4
        %v1182 = vsel %vm521, %v1181, %v1140
        %v1183 = vrot.slane %v1140, 4
        %v1184 = vsel %vm521, %v1164, %v1183
        %v1185 = vrot.slane %v1172, 4
        %v1186 = vsel %vm521, %v1185, %v1148
        %v1187 = vrot.slane %v1148, 4
        %v1188 = vsel %vm521, %v1172, %v1187
        %v1189 = vrot.slane %v1176, 4
        %v1190 = vsel %vm521, %v1189, %v1152
        %v1191 = vrot.slane %v1152, 4
        %v1192 = vsel %vm521, %v1176, %v1191
        %v1193 = vrot.slane %v194, 4
        %v1194 = vsel %vm521, %v1193, %v144
        %v1195 = vrot.slane %v144, 4
        %v1196 = vsel %vm521, %v194, %v1195
        %v1198 = vunpack.c.l.s4 1983009808
        %v1199 = vunpack.c.0.s8 %v1198
        %v1200 = vperm.slane %v1194, %v1199
        %v1202 = vunpack.c.l.s4 1983009808
        %v1203 = vunpack.c.0.s8 %v1202
        %v1204 = vperm.slane %v1196, %v1203
        %v1205 = vrot.slane %v219, 4
        %v1206 = vsel %vm521, %v1205, %v169
        %v1207 = vrot.slane %v169, 4
        %v1208 = vsel %vm521, %v219, %v1207
        %v1210 = vunpack.c.l.s4 1983009808
        %v1211 = vunpack.c.0.s8 %v1210
        %v1212 = vperm.slane %v1206, %v1211
        %v1214 = vunpack.c.l.s4 1983009808
        %v1215 = vunpack.c.0.s8 %v1214
        %v1216 = vperm.slane %v1208, %v1215
        %v1217 = vrot.slane %v294, 4
        %v1218 = vsel %vm521, %v1217, %v244
        %v1219 = vrot.slane %v244, 4
        %v1220 = vsel %vm521, %v294, %v1219
        %v1222 = vunpack.c.l.s4 1983009808
        %v1223 = vunpack.c.0.s8 %v1222
        %v1224 = vperm.slane %v1218, %v1223
        %v1226 = vunpack.c.l.s4 1983009808
        %v1227 = vunpack.c.0.s8 %v1226
        %v1228 = vperm.slane %v1220, %v1227
        %v1229 = vrot.slane %v319, 4
        %v1230 = vsel %vm521, %v1229, %v269
        %v1231 = vrot.slane %v269, 4
        %v1232 = vsel %vm521, %v319, %v1231
        %v1234 = vunpack.c.l.s4 1983009808
        %v1235 = vunpack.c.0.s8 %v1234
        %v1236 = vperm.slane %v1230, %v1235
        %v1238 = vunpack.c.l.s4 1983009808
        %v1239 = vunpack.c.0.s8 %v1238
        %v1240 = vperm.slane %v1232, %v1239
        %v1241 = vrot.slane %v1212, 4
        %v1242 = vsel %vm521, %v1241, %v1200
        %v1243 = vrot.slane %v1200, 4
        %v1244 = vsel %vm521, %v1212, %v1243
        %v1246 = vunpack.c.l.s4 1934713408
        %v1247 = vunpack.c.0.s8 %v1246
        %v1248 = vperm.slane %v1242, %v1247
        %v1250 = vunpack.c.l.s4 1934713408
        %v1251 = vunpack.c.0.s8 %v1250
        %v1252 = vperm.slane %v1244, %v1251
        %v1253 = vrot.slane %v1216, 4
        %v1254 = vsel %vm521, %v1253, %v1204
        %v1255 = vrot.slane %v1204, 4
        %v1256 = vsel %vm521, %v1216, %v1255
        %v1258 = vunpack.c.l.s4 1934713408
        %v1259 = vunpack.c.0.s8 %v1258
        %v1260 = vperm.slane %v1254, %v1259
        %v1262 = vunpack.c.l.s4 1934713408
        %v1263 = vunpack.c.0.s8 %v1262
        %v1264 = vperm.slane %v1256, %v1263
        %v1265 = vrot.slane %v1236, 4
        %v1266 = vsel %vm521, %v1265, %v1224
        %v1267 = vrot.slane %v1224, 4
        %v1268 = vsel %vm521, %v1236, %v1267
        %v1270 = vunpack.c.l.s4 1934713408
        %v1271 = vunpack.c.0.s8 %v1270
        %v1272 = vperm.slane %v1266, %v1271
        %v1274 = vunpack.c.l.s4 1934713408
        %v1275 = vunpack.c.0.s8 %v1274
        %v1276 = vperm.slane %v1268, %v1275
        %v1277 = vrot.slane %v1240, 4
        %v1278 = vsel %vm521, %v1277, %v1228
        %v1279 = vrot.slane %v1228, 4
        %v1280 = vsel %vm521, %v1240, %v1279
        %v1282 = vunpack.c.l.s4 1934713408
        %v1283 = vunpack.c.0.s8 %v1282
        %v1284 = vperm.slane %v1278, %v1283
        %v1286 = vunpack.c.l.s4 1934713408
        %v1287 = vunpack.c.0.s8 %v1286
        %v1288 = vperm.slane %v1280, %v1287
        %v1289 = vrot.slane %v1272, 4
        %v1290 = vsel %vm521, %v1289, %v1248
        %v1291 = vrot.slane %v1248, 4
        %v1292 = vsel %vm521, %v1272, %v1291
        %v1293 = vrot.slane %v1276, 4
        %v1294 = vsel %vm521, %v1293, %v1252
        %v1295 = vrot.slane %v1252, 4
        %v1296 = vsel %vm521, %v1276, %v1295
        %v1297 = vrot.slane %v1284, 4
        %v1298 = vsel %vm521, %v1297, %v1260
        %v1299 = vrot.slane %v1260, 4
        %v1300 = vsel %vm521, %v1284, %v1299
        %v1301 = vrot.slane %v1288, 4
        %v1302 = vsel %vm521, %v1301, %v1264
        %v1303 = vrot.slane %v1264, 4
        %v1304 = vsel %vm521, %v1288, %v1303
        %v1305 = vrot.slane %v394, 4
        %v1306 = vsel %vm521, %v1305, %v344
        %v1307 = vrot.slane %v344, 4
        %v1308 = vsel %vm521, %v394, %v1307
        %v1310 = vunpack.c.l.s4 1983009808
        %v1311 = vunpack.c.0.s8 %v1310
        %v1312 = vperm.slane %v1306, %v1311
        %v1314 = vunpack.c.l.s4 1983009808
        %v1315 = vunpack.c.0.s8 %v1314
        %v1316 = vperm.slane %v1308, %v1315
        %v1317 = vrot.slane %v419, 4
        %v1318 = vsel %vm521, %v1317, %v369
        %v1319 = vrot.slane %v369, 4
        %v1320 = vsel %vm521, %v419, %v1319
        %v1322 = vunpack.c.l.s4 1983009808
        %v1323 = vunpack.c.0.s8 %v1322
        %v1324 = vperm.slane %v1318, %v1323
        %v1326 = vunpack.c.l.s4 1983009808
        %v1327 = vunpack.c.0.s8 %v1326
        %v1328 = vperm.slane %v1320, %v1327
        %v1329 = vrot.slane %v494, 4
        %v1330 = vsel %vm521, %v1329, %v444
        %v1331 = vrot.slane %v444, 4
        %v1332 = vsel %vm521, %v494, %v1331
        %v1334 = vunpack.c.l.s4 1983009808
        %v1335 = vunpack.c.0.s8 %v1334
        %v1336 = vperm.slane %v1330, %v1335
        %v1338 = vunpack.c.l.s4 1983009808
        %v1339 = vunpack.c.0.s8 %v1338
        %v1340 = vperm.slane %v1332, %v1339
        %v1341 = vrot.slane %v519, 4
        %v1342 = vsel %vm521, %v1341, %v469
        %v1343 = vrot.slane %v469, 4
        %v1344 = vsel %vm521, %v519, %v1343
        %v1346 = vunpack.c.l.s4 1983009808
        %v1347 = vunpack.c.0.s8 %v1346
        %v1348 = vperm.slane %v1342, %v1347
        %v1350 = vunpack.c.l.s4 1983009808
        %v1351 = vunpack.c.0.s8 %v1350
        %v1352 = vperm.slane %v1344, %v1351
        %v1353 = vrot.slane %v1324, 4
        %v1354 = vsel %vm521, %v1353, %v1312
        %v1355 = vrot.slane %v1312, 4
        %v1356 = vsel %vm521, %v1324, %v1355
        %v1358 = vunpack.c.l.s4 1934713408
        %v1359 = vunpack.c.0.s8 %v1358
        %v1360 = vperm.slane %v1354, %v1359
        %v1362 = vunpack.c.l.s4 1934713408
        %v1363 = vunpack.c.0.s8 %v1362
        %v1364 = vperm.slane %v1356, %v1363
        %v1365 = vrot.slane %v1328, 4
        %v1366 = vsel %vm521, %v1365, %v1316
        %v1367 = vrot.slane %v1316, 4
        %v1368 = vsel %vm521, %v1328, %v1367
        %v1370 = vunpack.c.l.s4 1934713408
        %v1371 = vunpack.c.0.s8 %v1370
        %v1372 = vperm.slane %v1366, %v1371
        %v1374 = vunpack.c.l.s4 1934713408
        %v1375 = vunpack.c.0.s8 %v1374
        %v1376 = vperm.slane %v1368, %v1375
        %v1377 = vrot.slane %v1348, 4
        %v1378 = vsel %vm521, %v1377, %v1336
        %v1379 = vrot.slane %v1336, 4
        %v1380 = vsel %vm521, %v1348, %v1379
        %v1382 = vunpack.c.l.s4 1934713408
        %v1383 = vunpack.c.0.s8 %v1382
        %v1384 = vperm.slane %v1378, %v1383
        %v1386 = vunpack.c.l.s4 1934713408
        %v1387 = vunpack.c.0.s8 %v1386
        %v1388 = vperm.slane %v1380, %v1387
        %v1389 = vrot.slane %v1352, 4
        %v1390 = vsel %vm521, %v1389, %v1340
        %v1391 = vrot.slane %v1340, 4
        %v1392 = vsel %vm521, %v1352, %v1391
        %v1394 = vunpack.c.l.s4 1934713408
        %v1395 = vunpack.c.0.s8 %v1394
        %v1396 = vperm.slane %v1390, %v1395
        %v1398 = vunpack.c.l.s4 1934713408
        %v1399 = vunpack.c.0.s8 %v1398
        %v1400 = vperm.slane %v1392, %v1399
        %v1401 = vrot.slane %v1384, 4
        %v1402 = vsel %vm521, %v1401, %v1360
        %v1403 = vrot.slane %v1360, 4
        %v1404 = vsel %vm521, %v1384, %v1403
        %v1405 = vrot.slane %v1388, 4
        %v1406 = vsel %vm521, %v1405, %v1364
        %v1407 = vrot.slane %v1364, 4
        %v1408 = vsel %vm521, %v1388, %v1407
        %v1409 = vrot.slane %v1396, 4
        %v1410 = vsel %vm521, %v1409, %v1372
        %v1411 = vrot.slane %v1372, 4
        %v1412 = vsel %vm521, %v1396, %v1411
        %v1413 = vrot.slane %v1400, 4
        %v1414 = vsel %vm521, %v1413, %v1376
        %v1415 = vrot.slane %v1376, 4
        %v1416 = vsel %vm521, %v1400, %v1415
        %1419 = vrot.lane.b32.xlu0 %v620, 2
        %v1420 = vpop.permute.xlu0 %1419
        %1421 = vrot.lane.b32.xlu0 %v732, 2
        %v1422 = vpop.permute.xlu0 %1421
        %1427 = vrot.lane.b32.xlu0 %v622, 4
        %v1428 = vpop.permute.xlu0 %1427
        %1429 = vrot.lane.b32.xlu0 %v734, 4
        %v1430 = vpop.permute.xlu0 %1429
        %1435 = vrot.lane.b32.xlu0 %v624, 6
        %v1436 = vpop.permute.xlu0 %1435
        %1437 = vrot.lane.b32.xlu0 %v736, 6
        %v1438 = vpop.permute.xlu0 %1437
        %1443 = vrot.lane.b32.xlu0 %v626, 8
        %v1444 = vpop.permute.xlu0 %1443
        %1445 = vrot.lane.b32.xlu0 %v738, 8
        %v1446 = vpop.permute.xlu0 %1445
        %1451 = vrot.lane.b32.xlu0 %v628, 10
        %v1452 = vpop.permute.xlu0 %1451
        %1453 = vrot.lane.b32.xlu0 %v740, 10
        %v1454 = vpop.permute.xlu0 %1453
        %1459 = vrot.lane.b32.xlu0 %v630, 12
        %v1460 = vpop.permute.xlu0 %1459
        %1461 = vrot.lane.b32.xlu0 %v742, 12
        %v1462 = vpop.permute.xlu0 %1461
        %1467 = vrot.lane.b32.xlu0 %v632, 14
        %v1468 = vpop.permute.xlu0 %1467
        %1469 = vrot.lane.b32.xlu0 %v744, 14
        %v1470 = vpop.permute.xlu0 %1469
        %1475 = vrot.lane.b32.xlu0 %v842, 16
        %v1476 = vpop.permute.xlu0 %1475
        %1477 = vrot.lane.b32.xlu0 %v954, 16
        %v1478 = vpop.permute.xlu0 %1477
        %1483 = vrot.lane.b32.xlu0 %v844, 18
        %v1484 = vpop.permute.xlu0 %1483
        %1485 = vrot.lane.b32.xlu0 %v956, 18
        %v1486 = vpop.permute.xlu0 %1485
        %1491 = vrot.lane.b32.xlu0 %v846, 20
        %v1492 = vpop.permute.xlu0 %1491
        %1493 = vrot.lane.b32.xlu0 %v958, 20
        %v1494 = vpop.permute.xlu0 %1493
        %1499 = vrot.lane.b32.xlu0 %v848, 22
        %v1500 = vpop.permute.xlu0 %1499
        %1501 = vrot.lane.b32.xlu0 %v960, 22
        %v1502 = vpop.permute.xlu0 %1501
        %1507 = vrot.lane.b32.xlu0 %v850, 24
        %v1508 = vpop.permute.xlu0 %1507
        %1509 = vrot.lane.b32.xlu0 %v962, 24
        %v1510 = vpop.permute.xlu0 %1509
        %1515 = vrot.lane.b32.xlu0 %v852, 26
        %v1516 = vpop.permute.xlu0 %1515
        %1517 = vrot.lane.b32.xlu0 %v964, 26
        %v1518 = vpop.permute.xlu0 %1517
        %1523 = vrot.lane.b32.xlu0 %v854, 28
        %v1524 = vpop.permute.xlu0 %1523
        %1525 = vrot.lane.b32.xlu0 %v966, 28
        %v1526 = vpop.permute.xlu0 %1525
        %1531 = vrot.lane.b32.xlu0 %v856, 30
        %v1532 = vpop.permute.xlu0 %1531
        %1533 = vrot.lane.b32.xlu0 %v968, 30
        %v1534 = vpop.permute.xlu0 %1533
        %1539 = vrot.lane.b32.xlu0 %v1066, 32
        %v1540 = vpop.permute.xlu0 %1539
        %1541 = vrot.lane.b32.xlu0 %v1178, 32
        %v1542 = vpop.permute.xlu0 %1541
        %1547 = vrot.lane.b32.xlu0 %v1068, 34
        %v1548 = vpop.permute.xlu0 %1547
        %1549 = vrot.lane.b32.xlu0 %v1180, 34
        %v1550 = vpop.permute.xlu0 %1549
        %1555 = vrot.lane.b32.xlu0 %v1070, 36
        %v1556 = vpop.permute.xlu0 %1555
        %1557 = vrot.lane.b32.xlu0 %v1182, 36
        %v1558 = vpop.permute.xlu0 %1557
        %1563 = vrot.lane.b32.xlu0 %v1072, 38
        %v1564 = vpop.permute.xlu0 %1563
        %1565 = vrot.lane.b32.xlu0 %v1184, 38
        %v1566 = vpop.permute.xlu0 %1565
        %1571 = vrot.lane.b32.xlu0 %v1074, 40
        %v1572 = vpop.permute.xlu0 %1571
        %1573 = vrot.lane.b32.xlu0 %v1186, 40
        %v1574 = vpop.permute.xlu0 %1573
        %1579 = vrot.lane.b32.xlu0 %v1076, 42
        %v1580 = vpop.permute.xlu0 %1579
        %1581 = vrot.lane.b32.xlu0 %v1188, 42
        %v1582 = vpop.permute.xlu0 %1581
        %1587 = vrot.lane.b32.xlu0 %v1078, 44
        %v1588 = vpop.permute.xlu0 %1587
        %1589 = vrot.lane.b32.xlu0 %v1190, 44
        %v1590 = vpop.permute.xlu0 %1589
        %1595 = vrot.lane.b32.xlu0 %v1080, 46
        %v1596 = vpop.permute.xlu0 %1595
        %1597 = vrot.lane.b32.xlu0 %v1192, 46
        %v1598 = vpop.permute.xlu0 %1597
        %1603 = vrot.lane.b32.xlu0 %v1290, 48
        %v1604 = vpop.permute.xlu0 %1603
        %1605 = vrot.lane.b32.xlu0 %v1402, 48
        %v1606 = vpop.permute.xlu0 %1605
        %1611 = vrot.lane.b32.xlu0 %v1292, 50
        %v1612 = vpop.permute.xlu0 %1611
        %1613 = vrot.lane.b32.xlu0 %v1404, 50
        %v1614 = vpop.permute.xlu0 %1613
        %1619 = vrot.lane.b32.xlu0 %v1294, 52
        %v1620 = vpop.permute.xlu0 %1619
        %1621 = vrot.lane.b32.xlu0 %v1406, 52
        %v1622 = vpop.permute.xlu0 %1621
        %1627 = vrot.lane.b32.xlu0 %v1296, 54
        %v1628 = vpop.permute.xlu0 %1627
        %1629 = vrot.lane.b32.xlu0 %v1408, 54
        %v1630 = vpop.permute.xlu0 %1629
        %1635 = vrot.lane.b32.xlu0 %v1298, 56
        %v1636 = vpop.permute.xlu0 %1635
        %1637 = vrot.lane.b32.xlu0 %v1410, 56
        %v1638 = vpop.permute.xlu0 %1637
        %1643 = vrot.lane.b32.xlu0 %v1300, 58
        %v1644 = vpop.permute.xlu0 %1643
        %1645 = vrot.lane.b32.xlu0 %v1412, 58
        %v1646 = vpop.permute.xlu0 %1645
        %1651 = vrot.lane.b32.xlu0 %v1302, 60
        %v1652 = vpop.permute.xlu0 %1651
        %1653 = vrot.lane.b32.xlu0 %v1414, 60
        %v1654 = vpop.permute.xlu0 %1653
        %1659 = vrot.lane.b32.xlu0 %v1304, 62
        %v1660 = vpop.permute.xlu0 %1659
        %1661 = vrot.lane.b32.xlu0 %v1416, 62
        %v1662 = vpop.permute.xlu0 %1661
        %vm1665 = vcmask 15360
        %v1666 = vsel %vm1665, %v618, %v1420
        %v1667 = vsel %vm1665, %v730, %v1422
        %vm1668 = vcmask 31744
        %v1669 = vsel %vm1668, %v1666, %v1428
        %v1670 = vsel %vm1668, %v1667, %v1430
        %vm1671 = vcmask 48128
        %v1672 = vsel %vm1671, %v1669, %v1436
        %v1673 = vsel %vm1671, %v1670, %v1438
        %vm1674 = vcmask 64512
        %v1675 = vsel %vm1674, %v1672, %v1444
        %v1676 = vsel %vm1674, %v1673, %v1446
        %vm1677 = vcmask 80896
        %v1678 = vsel %vm1677, %v1675, %v1452
        %v1679 = vsel %vm1677, %v1676, %v1454
        %vm1680 = vcmask 97280
        %v1681 = vsel %vm1680, %v1678, %v1460
        %v1682 = vsel %vm1680, %v1679, %v1462
        %vm1683 = vcmask 113664
        %v1684 = vsel %vm1683, %v1681, %v1468
        %v1685 = vsel %vm1683, %v1682, %v1470
        %vm1686 = vcmask 130048
        %v1687 = vsel %vm1686, %v1684, %v1476
        %v1688 = vsel %vm1686, %v1685, %v1478
        %vm1689 = vcmask 146432
        %v1690 = vsel %vm1689, %v1687, %v1484
        %v1691 = vsel %vm1689, %v1688, %v1486
        %vm1692 = vcmask 162816
        %v1693 = vsel %vm1692, %v1690, %v1492
        %v1694 = vsel %vm1692, %v1691, %v1494
        %vm1695 = vcmask 179200
        %v1696 = vsel %vm1695, %v1693, %v1500
        %v1697 = vsel %vm1695, %v1694, %v1502
        %vm1698 = vcmask 195584
        %v1699 = vsel %vm1698, %v1696, %v1508
        %v1700 = vsel %vm1698, %v1697, %v1510
        %vm1701 = vcmask 211968
        %v1702 = vsel %vm1701, %v1699, %v1516
        %v1703 = vsel %vm1701, %v1700, %v1518
        %vm1704 = vcmask 228352
        %v1705 = vsel %vm1704, %v1702, %v1524
        %v1706 = vsel %vm1704, %v1703, %v1526
        %vm1707 = vcmask 244736
        %v1708 = vsel %vm1707, %v1705, %v1532
        %v1709 = vsel %vm1707, %v1706, %v1534
        %vm1710 = vcmask 261120
        %v1711 = vsel %vm1710, %v1708, %v1540
        %v1712 = vsel %vm1710, %v1709, %v1542
        %vm1713 = vcmask 277504
        %v1714 = vsel %vm1713, %v1711, %v1548
        %v1715 = vsel %vm1713, %v1712, %v1550
        %vm1716 = vcmask 293888
        %v1717 = vsel %vm1716, %v1714, %v1556
        %v1718 = vsel %vm1716, %v1715, %v1558
        %vm1719 = vcmask 310272
        %v1720 = vsel %vm1719, %v1717, %v1564
        %v1721 = vsel %vm1719, %v1718, %v1566
        %vm1722 = vcmask 326656
        %v1723 = vsel %vm1722, %v1720, %v1572
        %v1724 = vsel %vm1722, %v1721, %v1574
        %vm1725 = vcmask 343040
        %v1726 = vsel %vm1725, %v1723, %v1580
        %v1727 = vsel %vm1725, %v1724, %v1582
        %vm1728 = vcmask 359424
        %v1729 = vsel %vm1728, %v1726, %v1588
        %v1730 = vsel %vm1728, %v1727, %v1590
        %vm1731 = vcmask 375808
        %v1732 = vsel %vm1731, %v1729, %v1596
        %v1733 = vsel %vm1731, %v1730, %v1598
        %vm1734 = vcmask 392192
        %v1735 = vsel %vm1734, %v1732, %v1604
        %v1736 = vsel %vm1734, %v1733, %v1606
        %vm1737 = vcmask 408576
        %v1738 = vsel %vm1737, %v1735, %v1612
        %v1739 = vsel %vm1737, %v1736, %v1614
        %vm1740 = vcmask 424960
        %v1741 = vsel %vm1740, %v1738, %v1620
        %v1742 = vsel %vm1740, %v1739, %v1622
        %vm1743 = vcmask 441344
        %v1744 = vsel %vm1743, %v1741, %v1628
        %v1745 = vsel %vm1743, %v1742, %v1630
        %vm1746 = vcmask 457728
        %v1747 = vsel %vm1746, %v1744, %v1636
        %v1748 = vsel %vm1746, %v1745, %v1638
        %vm1749 = vcmask 474112
        %v1750 = vsel %vm1749, %v1747, %v1644
        %v1751 = vsel %vm1749, %v1748, %v1646
        %vm1752 = vcmask 490496
        %v1753 = vsel %vm1752, %v1750, %v1652
        %v1754 = vsel %vm1752, %v1751, %v1654
        %vm1755 = vcmask 506880
        %v1756 = vsel %vm1755, %v1753, %v1660
        %v1757 = vsel %vm1755, %v1754, %v1662
        %vm1758 = vcmask 523264
        %1759 = vst.msk [vmem:[%s110] sm:$0xff] %vm1758, %v1756
        %1760 = vst.msk [vmem:[%s110 + $0x8] sm:$0xff] %vm1758, %v1757
        %1763 = vrot.lane.b32.xlu0 %v1756, 64
        %v1764 = vpop.permute.xlu0 %1763
        %1765 = vrot.lane.b32.xlu0 %v1757, 64
        %v1766 = vpop.permute.xlu0 %1765
        %vm1769 = vcmask 1048064
        %1770 = vst.msk [vmem:[%s110] sm:$0xff] %vm1769, %v1764
        %1771 = vst.msk [vmem:[%s110 + $0x8] sm:$0xff] %vm1769, %v1766
        %s1772 = sand.u32 %s49, 1
        %s1773 = scalar_lea.sflag [#allocation3], %s1772
        %s1774 = sand.u32 %s49, 1
        %s1775 = smul.addr %s1774, 16
        %s1776 = scalar_lea.vmem [#allocation2], %s1775
        // Predicated region
        $region25: #{tpu_custom_call.1} parent=23 // pred_check
          %p1777 = pneg %p59
        $region26: #{tpu_custom_call.1} parent=23 // pred_check_branch
          %1779 = sbr.rel (%p1777) target = $region28
        $region27: #{tpu_custom_call.1} parent=23 // pred_region
          %s1780 = smul.u32 2, %s15
          %1782 = vsyncadd %s1773, 0
          %s1783 = smul.addr %s1780, 8
          %s1784 = scalar_lea.hbm %s1, %s1783
          %s1785 = sshll.u32 %s1776, 4
          %s1786 = int_to_ptr.vmem [resolvable:$true] %s1785
          %s1787 = sshll.u32 %s1784, 4
          %s1788 = int_to_ptr.hbm [resolvable:$true] %s1787
          %1793 = dma.vmem_to_hbm [thread:$0]  %s1786, 256, %s1788, %s1773, 128, 128, 8
        $region28: #{tpu_custom_call.1} parent=23 // pred_fallthru
          _
      $region24: #{tpu_custom_call.1} parent=5 // pred_fallthru
        _
      %p1794 = scmp.le.s32.totalorder 2, %s10
      // Predicated region
      $region29: #{tpu_custom_call.1} parent=5 // pred_check
        %p1795 = pneg %p1794
      $region30: #{tpu_custom_call.1} parent=5 // pred_check_branch
        %1797 = sbr.rel (%p1795) target = $region32
      $region31: #{tpu_custom_call.1} parent=5 // pred_region
        %s1798 = ssub.s32 %s10, 2
        // Predicated region
        $region33: #{tpu_custom_call.1} parent=31 // pred_check
          %p1799 = pneg %p65
        $region34: #{tpu_custom_call.1} parent=31 // pred_check_branch
          %1801 = sbr.rel (%p1799) target = $region36
        $region35: #{tpu_custom_call.1} parent=31 // pred_region
          %s1802 = sand.u32 %s50, 1
          %s1803 = scalar_lea.sflag [#allocation3], %s1802
          %s1804 = sand.u32 %s50, 1
          %s1805 = smul.addr %s1804, 16
          %s1806 = scalar_lea.vmem [#allocation2], %s1805
          %1808 = dma.done %s1803, 256
        $region36: #{tpu_custom_call.1} parent=31 // pred_fallthru
          _
      $region32: #{tpu_custom_call.1} parent=5 // pred_fallthru
        _
    $region6: #{tpu_custom_call.1} parent=1 // loop_footer
      %s14 = sadd.s32 1, %s10
    $region7: #{tpu_custom_call.1} parent=1 // loop_footer_branch
      %9 = sbr.rel target = $region3
    $region8: #{tpu_custom_call.1} parent=1 // loop_exit
      _
    %1809 = vsyncpa [#allocation3], 1
    %s1810 = scalar_lea.sflag [#allocation3], 1
    %1811 = vsyncpa %s1810, 1

</llo_original>
